<compile_context>
chip_gen: v5e
topology: v5e:2x2
jax: 0.10.0
libtpu: 0.0.40
codegen_flags: <defaults>
</compile_context>

<pallas_src>
import jax
import jax.numpy as jnp
from jax.experimental import pallas as pl
from jax.experimental.pallas import tpu as pltpu


# ------------------------------ kernel --------------------------------------
def _edge_feat_kernel(x1_ref, x2_ref, x3_ref, w_ref, b_ref, o_ref):
    # x*_ref : (Cin, tn) VMEM (input dtype)   w_ref : (Cin, 3) f32 VMEM
    # b_ref  : (1,) f32 SMEM (scalar)         o_ref : (1, tn) VMEM
    w = w_ref[...]
    x1 = x1_ref[...].astype(jnp.float32)
    x2 = x2_ref[...].astype(jnp.float32)
    x3 = x3_ref[...].astype(jnp.float32)
    s = x1 * w[:, 0:1] + x2 * w[:, 1:2] + x3 * w[:, 2:3]      # (Cin, tn), pure VPU
    out = jnp.sum(s, axis=0, keepdims=True) + b_ref[0]        # (1, tn), tiny sublane reduce
    o_ref[...] = out.astype(o_ref.dtype)


# --------------------------- tiling helpers ----------------------------------
def _round_up(x, m):
    return ((x + m - 1) // m) * m


def _round_down_128(x):
    return max(128, (x // 128) * 128)


# Scoped-VMEM budget for the pipelined buffers (double-buffered, sublane-padded)
# and the explicit compiler limit.  32 MiB is safe on v5e (128 MiB phys),
# v6e (128 MiB phys) and v7x (64 MiB phys / 32 MiB scoped default).
_BUFFER_BUDGET_BYTES = 20 * 1024 * 1024
_VMEM_LIMIT_BYTES = 32 * 1024 * 1024


def _pick_tile(hw, cin, itemsize, batch, tn_req):
    """Lane-tile size: (8,128)-legal, VMEM-budgeted (with sublane padding),
    and guaranteeing >= 2 grid steps for v7x's dual TensorCores."""
    pack = 8 * (4 // itemsize)                    # sublane packing: 8 (f32) / 16 (bf16)
    pc_in = _round_up(cin, pack)                  # padded rows of an input block
    pc_out = pack                                 # 1 output row pads to `pack`
    # 3 inputs + 1 output, each double-buffered by the Pallas pipeline.
    bytes_per_lane = 2 * (3 * pc_in + pc_out) * itemsize
    cap = max(128, _BUFFER_BUDGET_BYTES // bytes_per_lane)
    tile = min(tn_req, cap)
    if hw <= tile:
        # Full last dim is always a legal block.
        if batch == 1 and hw > 128:
            # v7x megacore: split into >= 2 tiles so both TCs get work.
            return _round_up(pl.cdiv(hw, 2), 128)
        return hw
    return _round_down_128(tile)                  # multiple of 128; ragged tail masked


# ------------------------------ wrapper --------------------------------------
def edge_featlayer_3(x1, x2, x3, params, *, tn=65536):
    """x1, x2, x3: (B, C_in, H, W) float32 or bfloat16 (NCHW, PyTorch convention)."""
    B, Cin, H, W = x1.shape
    C = params["w1"].shape[0]
    HW = H * W
    itemsize = jnp.dtype(x1.dtype).itemsize

    # ---- host-side algebraic fold of the four 1x1 convs (exact, all linear) --
    wm = params["wm"].reshape(3 * C).astype(jnp.float32)            # (3C,)
    wm1, wm2, wm3 = wm[:C], wm[C:2 * C], wm[2 * C:]
    v1 = (wm1 @ params["w1"].astype(jnp.float32)).reshape(Cin, 1)   # (Cin,1)
    v2 = (wm2 @ params["w2"].astype(jnp.float32)).reshape(Cin, 1)
    v3 = (wm3 @ params["w3"].astype(jnp.float32)).reshape(Cin, 1)
    w_all = jnp.concatenate([v1, v2, v3], axis=1)                   # (Cin, 3) f32
    b_total = (wm1 @ params["b1"].astype(jnp.float32)
               + wm2 @ params["b2"].astype(jnp.float32)
               + wm3 @ params["b3"].astype(jnp.float32)
               + params["bm"].astype(jnp.float32)[0]).reshape(1)    # (1,) f32

    # ---- lane-dense layout: pixels on lanes, channels on sublanes ------------
    x1f = x1.reshape(B, Cin, HW)      # free reshapes, no transpose / HBM copy
    x2f = x2.reshape(B, Cin, HW)
    x3f = x3.reshape(B, Cin, HW)

    tile = _pick_tile(HW, Cin, itemsize, B, tn)
    n_tiles = pl.cdiv(HW, tile)

    x_spec = pl.BlockSpec((pl.Squeezed(), Cin, tile), lambda b, t: (b, 0, t))
    w_spec = pl.BlockSpec((Cin, 3), lambda b, t: (0, 0))
    b_spec = pl.BlockSpec(memory_space=pltpu.MemorySpace.SMEM)
    o_spec = pl.BlockSpec((pl.Squeezed(), 1, tile), lambda b, t: (b, 0, t))

    # Advisory cost: purely memory-bound (3 reads + 1 write of the pixel grid).
    bytes_accessed = (3 * Cin + 1) * B * HW * itemsize + w_all.size * 4 + 4
    cost = pl.CostEstimate(flops=6 * Cin * B * HW,
                           transcendentals=0,
                           bytes_accessed=int(bytes_accessed))

    out = pl.pallas_call(
        _edge_feat_kernel,
        out_shape=jax.ShapeDtypeStruct((B, 1, HW), x1.dtype),
        grid_spec=pltpu.PrefetchScalarGridSpec(
            num_scalar_prefetch=0,
            grid=(B, n_tiles),
            in_specs=[x_spec, x_spec, x_spec, w_spec, b_spec],
            out_specs=o_spec,
        ),
        compiler_params=pltpu.CompilerParams(
            dimension_semantics=("parallel", "parallel"),
            vmem_limit_bytes=_VMEM_LIMIT_BYTES),
        cost_estimate=cost,
    )(x1f, x2f, x3f, w_all, b_total)

    return out.reshape(B, 1, H, W)     # already NCHW (B, 1, H, W)


# ------------------------- params / reference --------------------------------
def init_params(key, in_channel, channel):
    """Deterministic synthetic parameters (shapes match nn.Conv2d 1x1 weights)."""
    ks = jax.random.split(key, 8)
    def w(k, o, i):
        return jax.random.normal(k, (o, i), jnp.float32) * 0.1
    def b(k, o):
        return jax.random.normal(k, (o,), jnp.float32) * 0.1
    return {
        "w1": w(ks[0], channel, in_channel), "b1": b(ks[1], channel),
        "w2": w(ks[2], channel, in_channel), "b2": b(ks[3], channel),
        "w3": w(ks[4], channel, in_channel), "b3": b(ks[5], channel),
        "wm": w(ks[6], 1, 3 * channel),      "bm": b(ks[7], 1),
    }


def reference_jax(x1, x2, x3, params):
    """Pure-JAX reference of the PyTorch forward (unfolded, 1x1 convs as einsums)."""
    def conv1x1(x, w, bias):
        return jnp.einsum("bchw,oc->bohw", x.astype(jnp.float32), w) \
            + bias[None, :, None, None]
    y1 = conv1x1(x1, params["w1"], params["b1"])
    y2 = conv1x1(x2, params["w2"], params["b2"])
    y3 = conv1x1(x3, params["w3"], params["b3"])
    ycat = jnp.concatenate([y1, y2, y3], axis=1)
    return conv1x1(ycat, params["wm"], params["bm"])


if __name__ == "__main__":
    B, Cin, C, H, W = 2, 4, 8, 16, 16
    key = jax.random.PRNGKey(0)
    k1, k2, k3, kp = jax.random.split(key, 4)
    x1 = jax.random.normal(k1, (B, Cin, H, W), jnp.float32)
    x2 = jax.random.normal(k2, (B, Cin, H, W), jnp.float32)
    x3 = jax.random.normal(k3, (B, Cin, H, W), jnp.float32)
    params = init_params(kp, Cin, C)

    out = edge_featlayer_3(x1, x2, x3, params)
    out = jax.block_until_ready(out)

    ref = reference_jax(x1, x2, x3, params)
    assert out.shape == (B, 1, H, W), out.shape
    # Host-side fold changes f32 summation order vs. the unfolded reference.
    assert jnp.allclose(out, ref, atol=1e-4, rtol=1e-4), \
        float(jnp.max(jnp.abs(out - ref)))
    print("KERNEL_OK")
</pallas_src>

<mosaic_0001>
module attributes {stable_mosaic.version = 11 : i64} {
  func.func @_edge_feat_kernel(%arg0: i32, %arg1: i32, %arg2: memref<1x4x256xf32, #tpu.memory_space<vmem>>, %arg3: memref<1x4x256xf32, #tpu.memory_space<vmem>>, %arg4: memref<1x4x256xf32, #tpu.memory_space<vmem>>, %arg5: memref<4x3xf32, #tpu.memory_space<vmem>>, %arg6: memref<1xf32, #tpu.memory_space<smem>>, %arg7: memref<1x1x256xf32, #tpu.memory_space<vmem>>) attributes {dimension_semantics = [#tpu.dimension_semantics<parallel>, #tpu.dimension_semantics<parallel>], iteration_bounds = array<i64: 2, 1>, scalar_prefetch = 0 : i64, scratch_operands = 0 : i64, tpu.core_type = #tpu.core_type<tc>, window_params = [{transform_indices = @transform_0, window_bounds = array<i64: 1, 4, 256>}, {transform_indices = @transform_1, window_bounds = array<i64: 1, 4, 256>}, {transform_indices = @transform_2, window_bounds = array<i64: 1, 4, 256>}, {pipeline_mode = #tpu.pipeline_mode<synchronous>, transform_indices = @transform_3, window_bounds = array<i64: 4, 3>}, {transform_indices = @transform_4, window_bounds = array<i64: 1>}, {transform_indices = @transform_5, window_bounds = array<i64: 1, 1, 256>}]} {
    %c0 = arith.constant 0 : index
    %c0_0 = arith.constant 0 : index
    %0 = vector.load %arg5[%c0, %c0_0] : memref<4x3xf32, #tpu.memory_space<vmem>>, vector<4x3xf32>
    %c0_1 = arith.constant 0 : index
    %c0_2 = arith.constant 0 : index
    %c0_3 = arith.constant 0 : index
    %1 = vector.load %arg2[%c0_1, %c0_2, %c0_3] : memref<1x4x256xf32, #tpu.memory_space<vmem>>, vector<1x4x256xf32>
    %2 = vector.shape_cast %1 : vector<1x4x256xf32> to vector<4x256xf32>
    %c0_4 = arith.constant 0 : index
    %c0_5 = arith.constant 0 : index
    %c0_6 = arith.constant 0 : index
    %3 = vector.load %arg3[%c0_4, %c0_5, %c0_6] : memref<1x4x256xf32, #tpu.memory_space<vmem>>, vector<1x4x256xf32>
    %4 = vector.shape_cast %3 : vector<1x4x256xf32> to vector<4x256xf32>
    %c0_7 = arith.constant 0 : index
    %c0_8 = arith.constant 0 : index
    %c0_9 = arith.constant 0 : index
    %5 = vector.load %arg4[%c0_7, %c0_8, %c0_9] : memref<1x4x256xf32, #tpu.memory_space<vmem>>, vector<1x4x256xf32>
    %6 = vector.shape_cast %5 : vector<1x4x256xf32> to vector<4x256xf32>
    %7 = vector.extract_strided_slice %0 {offsets = [0, 0], sizes = [4, 1], strides = [1, 1]} : vector<4x3xf32> to vector<4x1xf32>
    %8 = vector.broadcast %7 : vector<4x1xf32> to vector<4x256xf32>
    %9 = arith.mulf %2, %8 : vector<4x256xf32>
    %10 = vector.extract_strided_slice %0 {offsets = [0, 1], sizes = [4, 1], strides = [1, 1]} : vector<4x3xf32> to vector<4x1xf32>
    %11 = vector.broadcast %10 : vector<4x1xf32> to vector<4x256xf32>
    %12 = arith.mulf %4, %11 : vector<4x256xf32>
    %13 = arith.addf %9, %12 : vector<4x256xf32>
    %14 = vector.extract_strided_slice %0 {offsets = [0, 2], sizes = [4, 1], strides = [1, 1]} : vector<4x3xf32> to vector<4x1xf32>
    %15 = vector.broadcast %14 : vector<4x1xf32> to vector<4x256xf32>
    %16 = arith.mulf %6, %15 : vector<4x256xf32>
    %17 = arith.addf %13, %16 : vector<4x256xf32>
    %cst = arith.constant dense<0.000000e+00> : vector<256xf32>
    %18 = vector.multi_reduction <add>, %17, %cst [0] : vector<4x256xf32> to vector<256xf32>
    %19 = vector.shape_cast %18 : vector<256xf32> to vector<1x256xf32>
    %c0_10 = arith.constant 0 : index
    %20 = memref.load %arg6[%c0_10] : memref<1xf32, #tpu.memory_space<smem>>
    %21 = vector.broadcast %20 : f32 to vector<1x256xf32>
    %22 = arith.addf %19, %21 : vector<1x256xf32>
    %c0_11 = arith.constant 0 : index
    %c0_12 = arith.constant 0 : index
    %c0_13 = arith.constant 0 : index
    %23 = vector.load %arg7[%c0_11, %c0_12, %c0_13] : memref<1x1x256xf32, #tpu.memory_space<vmem>>, vector<1x1x256xf32>
    %24 = vector.shape_cast %23 : vector<1x1x256xf32> to vector<1x256xf32>
    %25 = vector.shape_cast %22 : vector<1x256xf32> to vector<1x1x256xf32>
    tpu.vector_store %arg7[%c0_11, %c0_12, %c0_13], %25 {strides = array<i32>} : memref<1x1x256xf32, #tpu.memory_space<vmem>>, vector<1x1x256xf32>,
    return
  }
  func.func @transform_0(%arg0: i32, %arg1: i32) -> (i32, i32, i32) {
    %c0_i32 = arith.constant 0 : i32
    %c0_i32_0 = arith.constant 0 : i32
    return %arg0, %c0_i32, %arg1 : i32, i32, i32
  }
  func.func @transform_1(%arg0: i32, %arg1: i32) -> (i32, i32, i32) {
    %c0_i32 = arith.constant 0 : i32
    %c0_i32_0 = arith.constant 0 : i32
    return %arg0, %c0_i32, %arg1 : i32, i32, i32
  }
  func.func @transform_2(%arg0: i32, %arg1: i32) -> (i32, i32, i32) {
    %c0_i32 = arith.constant 0 : i32
    %c0_i32_0 = arith.constant 0 : i32
    return %arg0, %c0_i32, %arg1 : i32, i32, i32
  }
  func.func @transform_3(%arg0: i32, %arg1: i32) -> (i32, i32) {
    %c0_i32 = arith.constant 0 : i32
    %c0_i32_0 = arith.constant 0 : i32
    %c0_i32_1 = arith.constant 0 : i32
    return %c0_i32, %c0_i32_0 : i32, i32
  }
  func.func @transform_4(%arg0: i32, %arg1: i32) -> i32 {
    %c0_i32 = arith.constant 0 : i32
    %c0_i32_0 = arith.constant 0 : i32
    return %c0_i32 : i32
  }
  func.func @transform_5(%arg0: i32, %arg1: i32) -> (i32, i32, i32) {
    %c0_i32 = arith.constant 0 : i32
    %c0_i32_0 = arith.constant 0 : i32
    return %arg0, %c0_i32, %arg1 : i32, i32, i32
  }
}

</mosaic_0001>

<llo_original>
// kernel: tpu_custom_call.1
$region0: #{tpu_custom_call.1}
  #allocation0 [shape = 'u32[]', space=smem, size = 0x4, offset = 0x4, fixed_abs, tag = 'smem constant byte address 0x4 - core index']
  #allocation1 [shape = 'u32[72,128]{1,0:T(1,128)}', space=vmem, size = 0x9000, scoped, tag = 'internal scratch']
  #allocation2 [shape = 'f32[1]{0:T(128)S(6)}', space=smem, size = 0x200, scoped, tag = 'scoped memory for tpu_custom_call.1']
  %s0 = inlined_call_operand.hbm [shape: f32[2,4,256], index: 0, kind: input, shape index: {}]
  %s1 = inlined_call_operand.hbm [shape: f32[2,4,256], index: 1, kind: input, shape index: {}]
  %s2 = inlined_call_operand.hbm [shape: f32[2,4,256], index: 2, kind: input, shape index: {}]
  %s3 = inlined_call_operand.vmem [shape: f32[4,3], index: 3, kind: input, shape index: {}]
  %s4 = inlined_call_operand.<no memory space> [shape: f32[1], index: 4, kind: input, shape index: {}]
  %s5 = inlined_call_operand.hbm [shape: f32[2,1,256], index: 5, kind: output, shape index: {}]
  %s6 = sld [smem:[#allocation0]]
  $region65: #{tpu_custom_call.1} parent=0
    _
  %s8 = ssub.s32 1, %s6
  %s9 = scalar_select 0, %s8, %s6
  %10 = sst [smem:[#allocation2]] %s4
  $region1: #{tpu_custom_call.1} parent=0
    #allocation3 [shape = 'u8[8192]{0}', space=vmem, size = 0x2000, scoped, tag = 'input window, operand 0']
    #allocation4 [shape = 's32[2]{0}', space=sflag, size = 0x8, scoped, tag = 'scoped memory for tpu_custom_call.1']
    #allocation5 [shape = 's32[2]{0}', space=sflag, size = 0x8, scoped, tag = 'scoped memory for tpu_custom_call.1']
    #allocation6 [shape = 'u8[8192]{0}', space=vmem, size = 0x2000, scoped, tag = 'input window, operand 1']
    #allocation7 [shape = 's32[2]{0}', space=sflag, size = 0x8, scoped, tag = 'scoped memory for tpu_custom_call.1']
    #allocation8 [shape = 'u8[8192]{0}', space=vmem, size = 0x2000, scoped, tag = 'input window, operand 2']
    #allocation9 [shape = 'u8[2048]{0}', space=vmem, size = 0x800, scoped, tag = 'output window, operand 0']
    %11 = vsyncpa [#allocation4], 0
    %s12 = scalar_lea.sflag [#allocation4], 1
    %13 = vsyncpa %s12, 0
    %14 = vsyncpa [#allocation7], 0
    %s15 = scalar_lea.sflag [#allocation7], 1
    %16 = vsyncpa %s15, 0
    %17 = vsyncpa [#allocation5], 0
    %s18 = scalar_lea.sflag [#allocation5], 1
    %19 = vsyncpa %s18, 0
    loop: start=0, step=1, limit=4
    $region2: #{tpu_custom_call.1} parent=1 // loop_pre_header
      _
    $region3: #{tpu_custom_call.1} parent=1 // loop_header
      %s21 = sphi 0, %s25
      %p22 = scmp.ge.s32.totalorder %s21, 4
      %s28 = sphi 0, %s40
      %s29 = sphi 0, %s36
      %s30 = sphi 0, %s28
      %s31 = sphi 0, %s29
      %s32 = sphi 0, %s30
      %s33 = sphi 0, %s31
      %s45 = sphi 0, %s47
      %s48 = sphi 0, %s45
      %s49 = sphi 0, %s48
      %s65 = sphi 0, %s49
      %s73 = sphi 0, %s75
      %s76 = sphi 0, %s73
      %s77 = sphi 0, %s76
      %s93 = sphi 0, %s77
      %s101 = sphi 0, %s103
      %s104 = sphi 0, %s101
      %s105 = sphi 0, %s104
      %s121 = sphi 0, %s105
      %s125 = sphi 0, %s125
      %s127 = sphi 0, %s125
      %s128 = sphi 0, %s127
      %s142 = sphi 0, %s128
      %s146 = sphi 0, %s146
      %s148 = sphi 0, %s146
      %s149 = sphi 0, %s148
      %s163 = sphi 0, %s149
      %s171 = sphi 0, %s173
      %s174 = sphi 0, %s171
      %s175 = sphi 0, %s174
      %s191 = sphi 0, %s175
    $region4: #{tpu_custom_call.1} parent=1 // loop_header_branch
      %24 = sbr.rel (%p22) target = $region8
    $region5: #{tpu_custom_call.1} parent=1 // loop_body
      %s26 = ssub.s32 %s21, 1
      %s27 = ssub.s32 %s21, 2
      %s34 = sadd.s32 1, %s29
      %p35 = scmp.ge.s32.totalorder %s34, 1
      %s36 = scalar_select %p35, 0, %s34
      %s37 = sadd.s32 1, %s28
      %s38 = scalar_select %p35, %s37, %s28
      %p39 = scmp.ge.s32.totalorder %s38, 2
      %s40 = scalar_select %p39, 0, %s38
      %s41 = ssub.s32 %s28, %s40
      %s42 = ssub.s32 %s29, %s36
      %s43 = sor.u32 %s41, %s42
      %p44 = scmp.eq.s32.totalorder %s43, 0
      %s46 = sadd.s32 %s45, 1
      %s47 = scalar_select %p44, %s45, %s46
      %p50 = pneg %p44
      %p51 = scmp.eq.s32.totalorder %s21, 1
      %p52 = por %p50, %p51
      %p53 = scmp.ne.s32.totalorder %s45, %s48
      %p54 = scmp.eq.s32.totalorder %s21, 0
      %p55 = por %p53, %p54
      %p56 = scmp.ne.s32.totalorder %s45, %s48
      %p57 = scmp.eq.s32.totalorder %s26, 1
      %p58 = por %p56, %p57
      %p59 = scmp.ne.s32.totalorder %s48, %s49
      %p60 = scmp.eq.s32.totalorder %s26, 0
      %p61 = por %p59, %p60
      %p62 = scmp.ne.s32.totalorder %s48, %s49
      %p63 = scmp.eq.s32.totalorder %s27, 1
      %p64 = por %p62, %p63
      %p66 = scmp.ne.s32.totalorder %s49, %s65
      %p67 = scmp.eq.s32.totalorder %s27, 0
      %p68 = por %p66, %p67
      %s69 = ssub.s32 %s28, %s40
      %s70 = ssub.s32 %s29, %s36
      %s71 = sor.u32 %s69, %s70
      %p72 = scmp.eq.s32.totalorder %s71, 0
      %s74 = sadd.s32 %s73, 1
      %s75 = scalar_select %p72, %s73, %s74
      %p78 = pneg %p72
      %p79 = scmp.eq.s32.totalorder %s21, 1
      %p80 = por %p78, %p79
      %p81 = scmp.ne.s32.totalorder %s73, %s76
      %p82 = scmp.eq.s32.totalorder %s21, 0
      %p83 = por %p81, %p82
      %p84 = scmp.ne.s32.totalorder %s73, %s76
      %p85 = scmp.eq.s32.totalorder %s26, 1
      %p86 = por %p84, %p85
      %p87 = scmp.ne.s32.totalorder %s76, %s77
      %p88 = scmp.eq.s32.totalorder %s26, 0
      %p89 = por %p87, %p88
      %p90 = scmp.ne.s32.totalorder %s76, %s77
      %p91 = scmp.eq.s32.totalorder %s27, 1
      %p92 = por %p90, %p91
      %p94 = scmp.ne.s32.totalorder %s77, %s93
      %p95 = scmp.eq.s32.totalorder %s27, 0
      %p96 = por %p94, %p95
      %s97 = ssub.s32 %s28, %s40
      %s98 = ssub.s32 %s29, %s36
      %s99 = sor.u32 %s97, %s98
      %p100 = scmp.eq.s32.totalorder %s99, 0
      %s102 = sadd.s32 %s101, 1
      %s103 = scalar_select %p100, %s101, %s102
      %p106 = pneg %p100
      %p107 = scmp.eq.s32.totalorder %s21, 1
      %p108 = por %p106, %p107
      %p109 = scmp.ne.s32.totalorder %s101, %s104
      %p110 = scmp.eq.s32.totalorder %s21, 0
      %p111 = por %p109, %p110
      %p112 = scmp.ne.s32.totalorder %s101, %s104
      %p113 = scmp.eq.s32.totalorder %s26, 1
      %p114 = por %p112, %p113
      %p115 = scmp.ne.s32.totalorder %s104, %s105
      %p116 = scmp.eq.s32.totalorder %s26, 0
      %p117 = por %p115, %p116
      %p118 = scmp.ne.s32.totalorder %s104, %s105
      %p119 = scmp.eq.s32.totalorder %s27, 1
      %p120 = por %p118, %p119
      %p122 = scmp.ne.s32.totalorder %s105, %s121
      %p123 = scmp.eq.s32.totalorder %s27, 0
      %p124 = por %p122, %p123
      %s126 = sadd.s32 %s125, 1
      %p129 = scmp.eq.s32.totalorder %s21, 1
      %p130 = scmp.ne.s32.totalorder %s125, %s127
      %p131 = scmp.eq.s32.totalorder %s21, 0
      %p132 = por %p130, %p131
      %p133 = scmp.ne.s32.totalorder %s125, %s127
      %p134 = scmp.eq.s32.totalorder %s26, 1
      %p135 = por %p133, %p134
      %p136 = scmp.ne.s32.totalorder %s127, %s128
      %p137 = scmp.eq.s32.totalorder %s26, 0
      %p138 = por %p136, %p137
      %p139 = scmp.ne.s32.totalorder %s127, %s128
      %p140 = scmp.eq.s32.totalorder %s27, 1
      %p141 = por %p139, %p140
      %p143 = scmp.ne.s32.totalorder %s128, %s142
      %p144 = scmp.eq.s32.totalorder %s27, 0
      %p145 = por %p143, %p144
      %s147 = sadd.s32 %s146, 1
      %p150 = scmp.eq.s32.totalorder %s21, 1
      %p151 = scmp.ne.s32.totalorder %s146, %s148
      %p152 = scmp.eq.s32.totalorder %s21, 0
      %p153 = por %p151, %p152
      %p154 = scmp.ne.s32.totalorder %s146, %s148
      %p155 = scmp.eq.s32.totalorder %s26, 1
      %p156 = por %p154, %p155
      %p157 = scmp.ne.s32.totalorder %s148, %s149
      %p158 = scmp.eq.s32.totalorder %s26, 0
      %p159 = por %p157, %p158
      %p160 = scmp.ne.s32.totalorder %s148, %s149
      %p161 = scmp.eq.s32.totalorder %s27, 1
      %p162 = por %p160, %p161
      %p164 = scmp.ne.s32.totalorder %s149, %s163
      %p165 = scmp.eq.s32.totalorder %s27, 0
      %p166 = por %p164, %p165
      %s167 = ssub.s32 %s28, %s40
      %s168 = ssub.s32 %s29, %s36
      %s169 = sor.u32 %s167, %s168
      %p170 = scmp.eq.s32.totalorder %s169, 0
      %s172 = sadd.s32 %s171, 1
      %s173 = scalar_select %p170, %s171, %s172
      %p176 = pneg %p170
      %p177 = scmp.eq.s32.totalorder %s21, 1
      %p178 = por %p176, %p177
      %p179 = scmp.ne.s32.totalorder %s171, %s174
      %p180 = scmp.eq.s32.totalorder %s21, 0
      %p181 = por %p179, %p180
      %p182 = scmp.ne.s32.totalorder %s171, %s174
      %p183 = scmp.eq.s32.totalorder %s26, 1
      %p184 = por %p182, %p183
      %p185 = scmp.ne.s32.totalorder %s174, %s175
      %p186 = scmp.eq.s32.totalorder %s26, 0
      %p187 = por %p185, %p186
      %p188 = scmp.ne.s32.totalorder %s174, %s175
      %p189 = scmp.eq.s32.totalorder %s27, 1
      %p190 = por %p188, %p189
      %p192 = scmp.ne.s32.totalorder %s175, %s191
      %p193 = scmp.eq.s32.totalorder %s27, 0
      %p194 = por %p192, %p193
      %p195 = scmp.le.s32.totalorder 1, %s21
      %p196 = scmp.lt.s32.totalorder %s21, 3
      %p197 = pnand %p195, %p196
      %p198 = pneg %p197
      // Predicated region
      $region9: #{tpu_custom_call.1} parent=5 // pred_check
        _
      $region10: #{tpu_custom_call.1} parent=5 // pred_check_branch
        %200 = sbr.rel (%p197) target = $region12
      $region11: #{tpu_custom_call.1} parent=5 // pred_region
        %s201 = ssub.s32 %s21, 1
        // Predicated region
        $region13: #{tpu_custom_call.1} parent=11 // pred_check
          %p202 = pneg %p138
        $region14: #{tpu_custom_call.1} parent=11 // pred_check_branch
          %204 = sbr.rel (%p202) target = $region16
        $region15: #{tpu_custom_call.1} parent=11 // pred_region
          _
        $region16: #{tpu_custom_call.1} parent=11 // pred_fallthru
          _
        // Predicated region
        $region17: #{tpu_custom_call.1} parent=11 // pred_check
          %p205 = pneg %p159
        $region18: #{tpu_custom_call.1} parent=11 // pred_check_branch
          %207 = sbr.rel (%p205) target = $region20
        $region19: #{tpu_custom_call.1} parent=11 // pred_region
          _
        $region20: #{tpu_custom_call.1} parent=11 // pred_fallthru
          _
      $region12: #{tpu_custom_call.1} parent=5 // pred_fallthru
        _
      %p208 = scmp.lt.s32.totalorder %s21, 2
      // Predicated region
      $region21: #{tpu_custom_call.1} parent=5 // pred_check
        %p209 = pneg %p208
      $region22: #{tpu_custom_call.1} parent=5 // pred_check_branch
        %211 = sbr.rel (%p209) target = $region24
      $region23: #{tpu_custom_call.1} parent=5 // pred_region
        // Predicated region
        $region25: #{tpu_custom_call.1} parent=23 // pred_check
          %p212 = pneg %p55
        $region26: #{tpu_custom_call.1} parent=23 // pred_check_branch
          %214 = sbr.rel (%p212) target = $region28
        $region27: #{tpu_custom_call.1} parent=23 // pred_region
          %s215 = sand.u32 %s45, 1
          %s216 = scalar_lea.sflag [#allocation4], %s215
          %s217 = sand.u32 %s45, 1
          %s218 = smul.addr %s217, 8
          %s219 = scalar_lea.vmem [#allocation3], %s218
          %s220 = smul.u32 2, %s29
          %222 = vsyncadd %s216, 0
          %s223 = smul.addr %s28, 2
          %s224 = sadd.s32 %s220, %s223
          %s225 = smul.addr %s224, 4
          %s226 = scalar_lea.hbm %s0, %s225
          %s228 = sshll.u32 %s226, 4
          %s229 = int_to_ptr.hbm [resolvable:$true] %s228
          %s230 = sshll.u32 %s219, 4
          %s231 = int_to_ptr.vmem [resolvable:$true] %s230
          %233 = dma.hbm_to_vmem [thread:$0]  %s229, 128, %s231, %s216
        $region28: #{tpu_custom_call.1} parent=23 // pred_fallthru
          _
        // Predicated region
        $region29: #{tpu_custom_call.1} parent=23 // pred_check
          %p234 = pneg %p83
        $region30: #{tpu_custom_call.1} parent=23 // pred_check_branch
          %236 = sbr.rel (%p234) target = $region32
        $region31: #{tpu_custom_call.1} parent=23 // pred_region
          %s237 = sand.u32 %s21, 1
          %s238 = scalar_lea.sflag [#allocation7], %s237
          %s239 = sand.u32 %s73, 1
          %s240 = smul.addr %s239, 8
          %s241 = scalar_lea.vmem [#allocation6], %s240
          %s242 = smul.u32 2, %s29
          %244 = vsyncadd %s238, 0
          %s245 = smul.addr %s28, 2
          %s246 = sadd.s32 %s242, %s245
          %s247 = smul.addr %s246, 4
          %s248 = scalar_lea.hbm %s1, %s247
          %s250 = sshll.u32 %s248, 4
          %s251 = int_to_ptr.hbm [resolvable:$true] %s250
          %s252 = sshll.u32 %s241, 4
          %s253 = int_to_ptr.vmem [resolvable:$true] %s252
          %255 = dma.hbm_to_vmem [thread:$0]  %s251, 128, %s253, %s238
        $region32: #{tpu_custom_call.1} parent=23 // pred_fallthru
          _
        // Predicated region
        $region33: #{tpu_custom_call.1} parent=23 // pred_check
          %p256 = pneg %p111
        $region34: #{tpu_custom_call.1} parent=23 // pred_check_branch
          %258 = sbr.rel (%p256) target = $region36
        $region35: #{tpu_custom_call.1} parent=23 // pred_region
          %s259 = sand.u32 %s21, 1
          %s260 = scalar_lea.sflag [#allocation7], %s259
          %s261 = sand.u32 %s101, 1
          %s262 = smul.addr %s261, 8
          %s263 = scalar_lea.vmem [#allocation8], %s262
          %s264 = smul.u32 2, %s29
          %266 = vsyncadd %s260, 0
          %s267 = smul.addr %s28, 2
          %s268 = sadd.s32 %s264, %s267
          %s269 = smul.addr %s268, 4
          %s270 = scalar_lea.hbm %s2, %s269
          %s272 = sshll.u32 %s270, 4
          %s273 = int_to_ptr.hbm [resolvable:$true] %s272
          %s274 = sshll.u32 %s263, 4
          %s275 = int_to_ptr.vmem [resolvable:$true] %s274
          %277 = dma.hbm_to_vmem [thread:$0]  %s273, 128, %s275, %s260
        $region36: #{tpu_custom_call.1} parent=23 // pred_fallthru
          _
      $region24: #{tpu_custom_call.1} parent=5 // pred_fallthru
        _
      %p278 = scmp.le.s32.totalorder 1, %s21
      %p279 = scmp.lt.s32.totalorder %s21, 3
      %p280 = pnand %p278, %p279
      %p281 = pneg %p280
      // Predicated region
      $region37: #{tpu_custom_call.1} parent=5 // pred_check
        _
      $region38: #{tpu_custom_call.1} parent=5 // pred_check_branch
        %283 = sbr.rel (%p280) target = $region40
      $region39: #{tpu_custom_call.1} parent=5 // pred_region
        %s284 = ssub.s32 %s21, 1
        %s285 = sand.u32 %s48, 1
        %s286 = scalar_lea.sflag [#allocation4], %s285
        %s287 = sand.u32 %s48, 1
        %s288 = smul.addr %s287, 8
        %s289 = scalar_lea.vmem [#allocation3], %s288
        // Predicated region
        $region41: #{tpu_custom_call.1} parent=39 // pred_check
          %p290 = pneg %p61
        $region42: #{tpu_custom_call.1} parent=39 // pred_check_branch
          %292 = sbr.rel (%p290) target = $region44
        $region43: #{tpu_custom_call.1} parent=39 // pred_region
          %294 = dma.done %s286, 128
        $region44: #{tpu_custom_call.1} parent=39 // pred_fallthru
          _
        %s295 = sand.u32 %s26, 1
        %s296 = scalar_lea.sflag [#allocation7], %s295
        %s297 = sand.u32 %s76, 1
        %s298 = smul.addr %s297, 8
        %s299 = scalar_lea.vmem [#allocation6], %s298
        // Predicated region
        $region45: #{tpu_custom_call.1} parent=39 // pred_check
          %p300 = pneg %p89
        $region46: #{tpu_custom_call.1} parent=39 // pred_check_branch
          %302 = sbr.rel (%p300) target = $region48
        $region47: #{tpu_custom_call.1} parent=39 // pred_region
          %304 = dma.done %s296, 128
        $region48: #{tpu_custom_call.1} parent=39 // pred_fallthru
          _
        %s305 = sand.u32 %s26, 1
        %s306 = scalar_lea.sflag [#allocation7], %s305
        %s307 = sand.u32 %s104, 1
        %s308 = smul.addr %s307, 8
        %s309 = scalar_lea.vmem [#allocation8], %s308
        // Predicated region
        $region49: #{tpu_custom_call.1} parent=39 // pred_check
          %p310 = pneg %p117
        $region50: #{tpu_custom_call.1} parent=39 // pred_check_branch
          %312 = sbr.rel (%p310) target = $region52
        $region51: #{tpu_custom_call.1} parent=39 // pred_region
          %314 = dma.done %s306, 128
        $region52: #{tpu_custom_call.1} parent=39 // pred_fallthru
          _
        %s315 = sand.u32 %s48, 1
        %s316 = scalar_lea.sflag [#allocation4], %s315
        %s317 = sand.u32 %s48, 1
        %s318 = smul.addr %s317, 8
        %s319 = scalar_lea.vmem [#allocation3], %s318
        %p320 = pneg %p61
        %p321 = pneg %p58
        %s322 = sand.u32 %s26, 1
        %s323 = scalar_lea.sflag [#allocation7], %s322
        %s324 = sand.u32 %s76, 1
        %s325 = smul.addr %s324, 8
        %s326 = scalar_lea.vmem [#allocation6], %s325
        %p327 = pneg %p89
        %p328 = pneg %p86
        %s329 = sand.u32 %s26, 1
        %s330 = scalar_lea.sflag [#allocation7], %s329
        %s331 = sand.u32 %s104, 1
        %s332 = smul.addr %s331, 8
        %s333 = scalar_lea.vmem [#allocation8], %s332
        %p334 = pneg %p117
        %p335 = pneg %p114
        %p336 = pneg %p138
        %p337 = pneg %p135
        %p338 = pneg %p159
        %p339 = pneg %p156
        %p340 = pneg %p187
        %p341 = pneg %p184
        %s342 = sand.u32 %s174, 1
        %s343 = scalar_lea.sflag [#allocation5], %s342
        %s344 = sand.u32 %s174, 1
        %s345 = smul.addr %s344, 2
        %s346 = scalar_lea.vmem [#allocation9], %s345
        %s347 = smul.u32 2, %s31
        %s348 = smul.u32 2, %s31
        %s349 = smul.u32 2, %s31
        %s350 = smul.u32 2, %s31
        %v351 = vld [vmem:[%s3] sm:$0xf]
        %v352 = vld [vmem:[%s289] sm:$0xff]
        %v353 = vld [vmem:[%s299] sm:$0xff]
        %v354 = vld [vmem:[%s309] sm:$0xff]
        %356 = vset.pattern.permute.xlu0 0
        %357 = vperm.xlu0 %356, %v351
        %v358 = vpop.permute.xlu0 %357
        %v360 = vunpack.c.l.s4 839922192
        %v361 = vunpack.c.0.s8 %v360
        %v362 = vperm.slane %v358, %v361
        %v364 = vmul.f32 %v352, %v362
        %365 = vset.pattern.permute.xlu0 1
        %366 = vperm.xlu0 %365, %v351
        %v367 = vpop.permute.xlu0 %366
        %v369 = vunpack.c.l.s4 839922192
        %v370 = vunpack.c.0.s8 %v369
        %v371 = vperm.slane %v367, %v370
        %v373 = vmul.f32 %v353, %v371
        %v374 = vadd.f32 %v364, %v373
        %375 = vset.pattern.permute.xlu0 2
        %376 = vperm.xlu0 %375, %v351
        %v377 = vpop.permute.xlu0 %376
        %v379 = vunpack.c.l.s4 839922192
        %v380 = vunpack.c.0.s8 %v379
        %v381 = vperm.slane %v377, %v380
        %v383 = vmul.f32 %v354, %v381
        %v384 = vadd.f32 %v374, %v383
        %386 = vst [vmem:[#allocation1] ss:$2 sm:$0xff] %v384
        %v387 = vld.sshfl [vmem:[#allocation1] sm:$0xff pattern:$0x75316420]
        %v388 = vld.sshfl [vmem:[#allocation1 + $0x8] sm:$0xff pattern:$0x75316420]
        %vm391 = vcmask 1043456
        %v392 = vsel %vm391, %v387, 0.0
        %v393 = vrot.slane %v392, 4
        %v394 = vadd.f32 %v392, %v393
        %v395 = vrot.slane %v394, 2
        %v396 = vadd.f32 %v394, %v395
        %v397 = vrot.slane %v396, 1
        %v398 = vadd.f32 %v396, %v397
        %v399 = vsel %vm391, %v388, 0.0
        %v400 = vrot.slane %v399, 4
        %v401 = vadd.f32 %v399, %v400
        %v402 = vrot.slane %v401, 2
        %v403 = vadd.f32 %v401, %v402
        %v404 = vrot.slane %v403, 1
        %v405 = vadd.f32 %v403, %v404
        %s406 = sld [smem:[#allocation2]]
        %v407 = vstv %s406
        %v408 = vadd.f32 %v398, %v407
        %v409 = vadd.f32 %v405, %v407
        %v412 = vrot.slane %v409, 7
        %vm413 = vcmask 1040384
        %v414 = vsel %vm413, %v408, %v412
        %v416 = vlaneseq
        %vm417 = vcmp.ge.s32.totalorder %v416, 0
        %vm418 = vcmp.lt.s32.totalorder %v416, 256
        %vm419 = vmand %vm417, %vm418
        %420 = vst.msk [vmem:[%s346] sm:$0x3] %vm419, %v414
        %s421 = sand.u32 %s174, 1
        %s422 = scalar_lea.sflag [#allocation5], %s421
        %s423 = sand.u32 %s174, 1
        %s424 = smul.addr %s423, 2
        %s425 = scalar_lea.vmem [#allocation9], %s424
        // Predicated region
        $region53: #{tpu_custom_call.1} parent=39 // pred_check
          %p426 = pneg %p184
        $region54: #{tpu_custom_call.1} parent=39 // pred_check_branch
          %428 = sbr.rel (%p426) target = $region56
        $region55: #{tpu_custom_call.1} parent=39 // pred_region
          %s429 = smul.u32 2, %s31
          %431 = vsyncadd %s422, 0
          %s432 = smul.addr %s30, 2
          %s433 = sadd.s32 %s429, %s432
          %s434 = scalar_lea.hbm %s5, %s433
          %s436 = sshll.u32 %s425, 4
          %s437 = int_to_ptr.vmem [resolvable:$true] %s436
          %s438 = sshll.u32 %s434, 4
          %s439 = int_to_ptr.hbm [resolvable:$true] %s438
          %441 = dma.vmem_to_hbm [thread:$0]  %s437, 32, %s439, %s422
        $region56: #{tpu_custom_call.1} parent=39 // pred_fallthru
          _
      $region40: #{tpu_custom_call.1} parent=5 // pred_fallthru
        _
      %p442 = scmp.le.s32.totalorder 2, %s21
      // Predicated region
      $region57: #{tpu_custom_call.1} parent=5 // pred_check
        %p443 = pneg %p442
      $region58: #{tpu_custom_call.1} parent=5 // pred_check_branch
        %445 = sbr.rel (%p443) target = $region60
      $region59: #{tpu_custom_call.1} parent=5 // pred_region
        %s446 = ssub.s32 %s21, 2
        // Predicated region
        $region61: #{tpu_custom_call.1} parent=59 // pred_check
          %p447 = pneg %p190
        $region62: #{tpu_custom_call.1} parent=59 // pred_check_branch
          %449 = sbr.rel (%p447) target = $region64
        $region63: #{tpu_custom_call.1} parent=59 // pred_region
          %s450 = sand.u32 %s175, 1
          %s451 = scalar_lea.sflag [#allocation5], %s450
          %s452 = sand.u32 %s175, 1
          %s453 = smul.addr %s452, 2
          %s454 = scalar_lea.vmem [#allocation9], %s453
          %456 = dma.done %s451, 32
        $region64: #{tpu_custom_call.1} parent=59 // pred_fallthru
          _
      $region60: #{tpu_custom_call.1} parent=5 // pred_fallthru
        _
    $region6: #{tpu_custom_call.1} parent=1 // loop_footer
      %s25 = sadd.s32 1, %s21
    $region7: #{tpu_custom_call.1} parent=1 // loop_footer_branch
      %20 = sbr.rel target = $region3
    $region8: #{tpu_custom_call.1} parent=1 // loop_exit
      _
    %457 = vsyncpa [#allocation4], 1
    %s458 = scalar_lea.sflag [#allocation4], 1
    %459 = vsyncpa %s458, 1
    %460 = vsyncpa [#allocation7], 1
    %s461 = scalar_lea.sflag [#allocation7], 1
    %462 = vsyncpa %s461, 1
    %463 = vsyncpa [#allocation5], 1
    %s464 = scalar_lea.sflag [#allocation5], 1
    %465 = vsyncpa %s464, 1

</llo_original>
